<compile_context>
chip_gen: v5e
topology: v5e:2x2
jax: 0.10.0
libtpu: 0.0.40
codegen_flags: <defaults>
</compile_context>

<pallas_src>
import functools

import jax
import jax.numpy as jnp
import numpy as np
from jax.experimental import pallas as pl
from jax.experimental.pallas import tpu as pltpu


def _round_up(x, m):
    return (x + m - 1) // m * m


def rnn_chunk_kernel(x_ref, wih_ref, bias_ref, whh_ref, out_ref,
                     gates_buf, h_carry, *, tc, n_chunks):
    """Grid step (b, c): gates for chunk c (pipelined one step ahead) plus the
    recurrence for chunk c-1.

    x_ref    : (Tc, Bb, Ip)    time-major input chunk min(c, n_chunks-1)
    wih_ref  : (Ip, Hp)        W_ih^T                 (VMEM-resident)
    bias_ref : (1, Hp)         b_ih + b_hh            (folded)
    whh_ref  : (Hp, Hp)        W_hh^T                 (VMEM-resident)
    out_ref  : (Tc, Bb, Hp)    hidden states of chunk max(c-1, 0), time-major
    gates_buf: (2, Tc, Bb, Hp) f32, double-buffered input projections
    h_carry  : (Bb, Hp)        f32, h_{t-1} carried across chunks
    """
    c = pl.program_id(1)
    _, bb, ip = x_ref.shape
    hp = whh_ref.shape[1]
    w_dtype = whh_ref.dtype

    @pl.when(c == 0)
    def _init():
        h_carry[...] = jnp.zeros_like(h_carry)

    # ---- input projection for chunk c, one chunk ahead of the recurrence --
    # One (Tc*Bb, Ip) x (Ip, Hp) MXU matmul; the result is staged through VMEM
    # so the unrolled recurrence below keeps only one (Bb, Hp) vreg-set live.
    @pl.when(c < n_chunks)
    def _project():
        slot = c % 2
        x2 = x_ref[...].reshape(tc * bb, ip).astype(w_dtype)
        g = jnp.dot(x2, wih_ref[...], preferred_element_type=jnp.float32)
        g = g + bias_ref[...]
        gates_buf[slot] = g.reshape(tc, bb, hp)

    # ---- recurrence for chunk c-1 (its gates already resident in VMEM) ----
    @pl.when(c > 0)
    def _recur():
        prev_slot = (c + 1) % 2          # same parity as (c-1), non-negative
        whh = whh_ref[...]               # RHS-stationary across the unroll
        h = h_carry[...]                 # (Bb, Hp) f32
        # Static unroll: every index below is compile-time, so gate reads are
        # leading-axis loads and output stores are lane-dense (Bb, Hp) slabs.
        for t in range(tc):
            g_t = gates_buf[prev_slot, t]                      # (Bb, Hp)
            h = jnp.tanh(g_t + jnp.dot(h.astype(w_dtype), whh,
                                       preferred_element_type=jnp.float32))
            out_ref[t] = h.astype(out_ref.dtype)
        h_carry[...] = h


def my_rnn_forward(x, w_ih, b_ih, w_hh, b_hh, *, chunk=32, batch_block=8,
                   weights_dtype=None):
    """x: (batch, seq, input).  Returns (output (B, S, H), hn (1, B, H))."""
    B, S, I = x.shape
    H = w_hh.shape[0]
    f32 = jnp.float32

    # vreg-friendly padding: batch -> 8 (sublane), hidden -> 128 (lane),
    # input -> 128 when moderately wide (lane-dense K), else -> 8.
    Bp = _round_up(B, 8)
    Hp = _round_up(H, 128)
    Ip = _round_up(I, 128) if I >= 64 else _round_up(I, 8)
    Tc = max(1, min(chunk, S))
    S_pad = _round_up(S, Tc)
    n_chunks = S_pad // Tc

    # Batch blocks: a multiple of 8 that divides Bp.  The batch axis is the
    # only parallelizable one (time is a true recurrence), so it is what lets
    # v7x's second TensorCore contribute.
    Bb = max(8, _round_up(min(batch_block, Bp), 8))
    while Bp % Bb:
        Bb -= 8
    n_b = Bp // Bb

    # bf16 weights (fp32 accumulation) at realistic hidden sizes; element-wise
    # math stays fp32 (v5e has no bf16 VPU/EUP path).
    w_dt = weights_dtype or (jnp.bfloat16 if H >= 512 else f32)

    # ---- host-side layout plumbing (outside the recurrence) ---------------
    x_p = jnp.pad(x.astype(f32), ((0, Bp - B), (0, S_pad - S), (0, Ip - I)))
    x_tm = jnp.transpose(x_p, (1, 0, 2))                        # (S_pad, Bp, Ip)
    wih_p = jnp.pad(jnp.transpose(w_ih).astype(f32),
                    ((0, Ip - I), (0, Hp - H))).astype(w_dt)    # (Ip, Hp)
    whh_p = jnp.pad(jnp.transpose(w_hh).astype(f32),
                    ((0, Hp - H), (0, Hp - H))).astype(w_dt)    # (Hp, Hp)
    bias_p = jnp.pad((b_ih + b_hh).astype(f32), (0, Hp - H)).reshape(1, Hp)

    kernel = functools.partial(rnn_chunk_kernel, tc=Tc, n_chunks=n_chunks)

    # VMEM footprint estimate -> raise the scoped limit only when needed
    # (defaults: 16 MiB v5e, 32 MiB v6e/v7x; v7x physical VMEM is 64 MiB).
    wbytes = jnp.dtype(w_dt).itemsize
    vmem_est = (2 * (Ip * Hp + Hp * Hp) * wbytes     # double-buffered weights
                + 2 * Hp * 4                         # bias
                + 2 * Tc * Bb * Ip * 4               # x blocks
                + 2 * Tc * Bb * Hp * 4               # out blocks
                + 2 * Tc * Bb * Hp * 4               # gates double buffer
                + Bb * Hp * 4)                       # carried h
    vmem_limit = None
    if vmem_est > 12 * 2**20:
        vmem_limit = int(min(vmem_est * 3 // 2 + (2 << 20), 120 * 2**20))

    out_tm = pl.pallas_call(
        kernel,
        out_shape=jax.ShapeDtypeStruct((S_pad, Bp, Hp), f32),
        grid_spec=pltpu.PrefetchScalarGridSpec(
            num_scalar_prefetch=0,
            # +1 prologue time step: gates for chunk 0 are produced one grid
            # step before their recurrence runs (software pipeline).
            grid=(n_b, n_chunks + 1),
            in_specs=[
                pl.BlockSpec((Tc, Bb, Ip),
                             lambda b, c: (jnp.minimum(c, n_chunks - 1), b, 0)),
                pl.BlockSpec((Ip, Hp), lambda b, c: (0, 0)),    # W_ih^T resident
                pl.BlockSpec((1, Hp), lambda b, c: (0, 0)),     # folded bias
                pl.BlockSpec((Hp, Hp), lambda b, c: (0, 0)),    # W_hh^T resident
            ],
            out_specs=pl.BlockSpec(
                (Tc, Bb, Hp), lambda b, c: (jnp.maximum(c - 1, 0), b, 0)),
            scratch_shapes=[
                pltpu.VMEM((2, Tc, Bb, Hp), jnp.float32),       # staged gates
                pltpu.VMEM((Bb, Hp), jnp.float32),              # carried h
            ],
        ),
        compiler_params=pltpu.CompilerParams(
            # Batch blocks are independent -> megacore-shardable on v7x;
            # the time axis is a true recurrence -> sequential.
            dimension_semantics=("parallel", "arbitrary"),
            vmem_limit_bytes=vmem_limit),
    )(x_tm, wih_p, bias_p, whh_p)

    output = jnp.transpose(out_tm, (1, 0, 2))[:B, :S, :H]        # (B, S, H)
    hn = out_tm[S - 1, :B, :H].reshape(1, B, H)                  # true step S-1
    return output, hn


def _reference(x, w_ih, b_ih, w_hh, b_hh):
    """Pure-JAX reference matching the PyTorch loop."""
    B, S, _ = x.shape
    H = w_hh.shape[0]
    h = jnp.zeros((B, H), jnp.float32)
    hs = []
    for i in range(S):
        xt = x[:, i, :]
        h = jnp.tanh(xt @ w_ih.T + b_ih + h @ w_hh.T + b_hh)
        hs.append(h)
    output = jnp.stack(hs, axis=1)
    hn = hs[-1].reshape(1, B, H)
    return output, hn


if __name__ == "__main__":
    batch, seq, input_size, hidden_size = 2, 8, 4, 32

    key = jax.random.PRNGKey(0)
    kx, k1, k2, k3, k4 = jax.random.split(key, 5)

    x = jax.random.normal(kx, (batch, seq, input_size), jnp.float32)

    # Deterministic init mimicking nn.Linear: U(-1/sqrt(fan_in), 1/sqrt(fan_in))
    bi = 1.0 / np.sqrt(input_size)
    bh = 1.0 / np.sqrt(hidden_size)
    w_ih = jax.random.uniform(k1, (hidden_size, input_size), jnp.float32, -bi, bi)
    b_ih = jax.random.uniform(k2, (hidden_size,), jnp.float32, -bi, bi)
    w_hh = jax.random.uniform(k3, (hidden_size, hidden_size), jnp.float32, -bh, bh)
    b_hh = jax.random.uniform(k4, (hidden_size,), jnp.float32, -bh, bh)

    output, hn = my_rnn_forward(x, w_ih, b_ih, w_hh, b_hh)
    jax.block_until_ready((output, hn))

    ref_out, ref_hn = _reference(x, w_ih, b_ih, w_hh, b_hh)
    np.testing.assert_allclose(np.asarray(output), np.asarray(ref_out),
                               rtol=1e-5, atol=1e-5)
    np.testing.assert_allclose(np.asarray(hn), np.asarray(ref_hn),
                               rtol=1e-5, atol=1e-5)
    assert output.shape == (batch, seq, hidden_size)
    assert hn.shape == (1, batch, hidden_size)

    print("KERNEL_OK")
</pallas_src>

<mosaic_0001>
module attributes {stable_mosaic.version = 11 : i64} {
  func.func @rnn_chunk_kernel(%arg0: i32, %arg1: i32, %arg2: memref<8x8x8xf32, #tpu.memory_space<vmem>>, %arg3: memref<8x128xf32, #tpu.memory_space<vmem>>, %arg4: memref<1x128xf32, #tpu.memory_space<vmem>>, %arg5: memref<128x128xf32, #tpu.memory_space<vmem>>, %arg6: memref<8x8x128xf32, #tpu.memory_space<vmem>>, %arg7: memref<2x8x8x128xf32, #tpu.memory_space<vmem>>, %arg8: memref<8x128xf32, #tpu.memory_space<vmem>>) attributes {dimension_semantics = [#tpu.dimension_semantics<parallel>, #tpu.dimension_semantics<arbitrary>], iteration_bounds = array<i64: 1, 2>, scalar_prefetch = 0 : i64, scratch_operands = 2 : i64, tpu.core_type = #tpu.core_type<tc>, window_params = [{transform_indices = @transform_0, window_bounds = array<i64: 8, 8, 8>}, {pipeline_mode = #tpu.pipeline_mode<synchronous>, transform_indices = @transform_1, window_bounds = array<i64: 8, 128>}, {pipeline_mode = #tpu.pipeline_mode<synchronous>, transform_indices = @transform_2, window_bounds = array<i64: 1, 128>}, {pipeline_mode = #tpu.pipeline_mode<synchronous>, transform_indices = @transform_3, window_bounds = array<i64: 128, 128>}, {transform_indices = @transform_4, window_bounds = array<i64: 8, 8, 128>}]} {
    %c0_i32 = arith.constant 0 : i32
    %0 = arith.cmpi eq, %arg1, %c0_i32 : i32
    %1 = arith.extui %0 : i1 to i32
    %c0_i32_0 = arith.constant 0 : i32
    %2 = arith.cmpi ne, %1, %c0_i32_0 : i32
    scf.if %2 {
      %cst = arith.constant 0.000000e+00 : f32
      %9 = vector.broadcast %cst : f32 to vector<8x128xf32>
      %c0 = arith.constant 0 : index
      %c0_4 = arith.constant 0 : index
      %10 = vector.load %arg8[%c0, %c0_4] : memref<8x128xf32, #tpu.memory_space<vmem>>, vector<8x128xf32>
      tpu.vector_store %arg8[%c0, %c0_4], %9 {strides = array<i32>} : memref<8x128xf32, #tpu.memory_space<vmem>>, vector<8x128xf32>,
    } else {
    }
    %c1_i32 = arith.constant 1 : i32
    %3 = arith.cmpi slt, %arg1, %c1_i32 : i32
    %4 = arith.extui %3 : i1 to i32
    %c0_i32_1 = arith.constant 0 : i32
    %5 = arith.cmpi ne, %4, %c0_i32_1 : i32
    scf.if %5 {
      %c2_i32 = arith.constant 2 : i32
      %c0_i32_4 = arith.constant 0 : i32
      %9 = arith.cmpi eq, %c2_i32, %c0_i32_4 : i32
      %c1_i32_5 = arith.constant 1 : i32
      %10 = arith.select %9, %c1_i32_5, %c2_i32 : i32
      %11 = arith.remsi %arg1, %10 : i32
      %c0_i32_6 = arith.constant 0 : i32
      %12 = arith.cmpi ne, %11, %c0_i32_6 : i32
      %c0_i32_7 = arith.constant 0 : i32
      %13 = arith.cmpi slt, %11, %c0_i32_7 : i32
      %c0_i32_8 = arith.constant 0 : i32
      %14 = arith.cmpi slt, %10, %c0_i32_8 : i32
      %15 = arith.xori %13, %14 : i1
      %16 = arith.andi %15, %12 : i1
      %17 = arith.addi %11, %10 : i32
      %18 = arith.select %16, %17, %11 : i32
      %c0 = arith.constant 0 : index
      %c0_9 = arith.constant 0 : index
      %c0_10 = arith.constant 0 : index
      %19 = vector.load %arg2[%c0, %c0_9, %c0_10] : memref<8x8x8xf32, #tpu.memory_space<vmem>>, vector<8x8x8xf32>
      %20 = vector.shape_cast %19 : vector<8x8x8xf32> to vector<64x8xf32>
      %c0_11 = arith.constant 0 : index
      %c0_12 = arith.constant 0 : index
      %21 = vector.load %arg3[%c0_11, %c0_12] : memref<8x128xf32, #tpu.memory_space<vmem>>, vector<8x128xf32>
      %cst = arith.constant dense<0.000000e+00> : vector<64x128xf32>
      %22 = tpu.matmul %20, %21, %cst {dimension_numbers = #tpu.dot_dimension_numbers<[1], [0], [0], [1], [0, 0, 1, 1], [], []>} : vector<64x8xf32>, vector<8x128xf32>, vector<64x128xf32> -> vector<64x128xf32>
      %c0_13 = arith.constant 0 : index
      %c0_14 = arith.constant 0 : index
      %23 = vector.load %arg4[%c0_13, %c0_14] : memref<1x128xf32, #tpu.memory_space<vmem>>, vector<1x128xf32>
      %24 = vector.broadcast %23 : vector<1x128xf32> to vector<64x128xf32>
      %25 = arith.addf %22, %24 : vector<64x128xf32>
      %26 = vector.shape_cast %25 : vector<64x128xf32> to vector<8x8x128xf32>
      %27 = arith.index_cast %18 : i32 to index
      %c0_15 = arith.constant 0 : index
      %c0_16 = arith.constant 0 : index
      %c0_17 = arith.constant 0 : index
      %28 = vector.load %arg7[%27, %c0_15, %c0_16, %c0_17] : memref<2x8x8x128xf32, #tpu.memory_space<vmem>>, vector<1x8x8x128xf32>
      %29 = vector.shape_cast %28 : vector<1x8x8x128xf32> to vector<8x8x128xf32>
      %30 = vector.shape_cast %26 : vector<8x8x128xf32> to vector<1x8x8x128xf32>
      tpu.vector_store %arg7[%27, %c0_15, %c0_16, %c0_17], %30 {strides = array<i32>} : memref<2x8x8x128xf32, #tpu.memory_space<vmem>>, vector<1x8x8x128xf32>,
    } else {
    }
    %c0_i32_2 = arith.constant 0 : i32
    %6 = arith.cmpi sgt, %arg1, %c0_i32_2 : i32
    %7 = arith.extui %6 : i1 to i32
    %c0_i32_3 = arith.constant 0 : i32
    %8 = arith.cmpi ne, %7, %c0_i32_3 : i32
    scf.if %8 {
      %c1_i32_4 = arith.constant 1 : i32
      %9 = arith.addi %arg1, %c1_i32_4 : i32
      %c2_i32 = arith.constant 2 : i32
      %c0_i32_5 = arith.constant 0 : i32
      %10 = arith.cmpi eq, %c2_i32, %c0_i32_5 : i32
      %c1_i32_6 = arith.constant 1 : i32
      %11 = arith.select %10, %c1_i32_6, %c2_i32 : i32
      %12 = arith.remsi %9, %11 : i32
      %c0_i32_7 = arith.constant 0 : i32
      %13 = arith.cmpi ne, %12, %c0_i32_7 : i32
      %c0_i32_8 = arith.constant 0 : i32
      %14 = arith.cmpi slt, %12, %c0_i32_8 : i32
      %c0_i32_9 = arith.constant 0 : i32
      %15 = arith.cmpi slt, %11, %c0_i32_9 : i32
      %16 = arith.xori %14, %15 : i1
      %17 = arith.andi %16, %13 : i1
      %18 = arith.addi %12, %11 : i32
      %19 = arith.select %17, %18, %12 : i32
      %c0 = arith.constant 0 : index
      %c0_10 = arith.constant 0 : index
      %20 = vector.load %arg5[%c0, %c0_10] : memref<128x128xf32, #tpu.memory_space<vmem>>, vector<128x128xf32>
      %c0_11 = arith.constant 0 : index
      %c0_12 = arith.constant 0 : index
      %21 = vector.load %arg8[%c0_11, %c0_12] : memref<8x128xf32, #tpu.memory_space<vmem>>, vector<8x128xf32>
      %22 = arith.index_cast %19 : i32 to index
      %c0_13 = arith.constant 0 : index
      %c0_14 = arith.constant 0 : index
      %c0_15 = arith.constant 0 : index
      %23 = vector.load %arg7[%22, %c0_13, %c0_14, %c0_15] : memref<2x8x8x128xf32, #tpu.memory_space<vmem>>, vector<1x1x8x128xf32>
      %24 = vector.shape_cast %23 : vector<1x1x8x128xf32> to vector<8x128xf32>
      %cst = arith.constant dense<0.000000e+00> : vector<8x128xf32>
      %25 = tpu.matmul %21, %20, %cst {dimension_numbers = #tpu.dot_dimension_numbers<[1], [0], [0], [1], [0, 0, 1, 1], [], []>} : vector<8x128xf32>, vector<128x128xf32>, vector<8x128xf32> -> vector<8x128xf32>
      %26 = arith.addf %24, %25 : vector<8x128xf32>
      %27 = math.tanh %26 : vector<8x128xf32>
      %c0_16 = arith.constant 0 : index
      %c0_17 = arith.constant 0 : index
      %c0_18 = arith.constant 0 : index
      %28 = vector.load %arg6[%c0_16, %c0_17, %c0_18] : memref<8x8x128xf32, #tpu.memory_space<vmem>>, vector<1x8x128xf32>
      %29 = vector.shape_cast %28 : vector<1x8x128xf32> to vector<8x128xf32>
      %30 = vector.shape_cast %27 : vector<8x128xf32> to vector<1x8x128xf32>
      tpu.vector_store %arg6[%c0_16, %c0_17, %c0_18], %30 {strides = array<i32>} : memref<8x8x128xf32, #tpu.memory_space<vmem>>, vector<1x8x128xf32>,
      %31 = arith.index_cast %19 : i32 to index
      %c1 = arith.constant 1 : index
      %c0_19 = arith.constant 0 : index
      %c0_20 = arith.constant 0 : index
      %32 = vector.load %arg7[%31, %c1, %c0_19, %c0_20] : memref<2x8x8x128xf32, #tpu.memory_space<vmem>>, vector<1x1x8x128xf32>
      %33 = vector.shape_cast %32 : vector<1x1x8x128xf32> to vector<8x128xf32>
      %cst_21 = arith.constant dense<0.000000e+00> : vector<8x128xf32>
      %34 = tpu.matmul %27, %20, %cst_21 {dimension_numbers = #tpu.dot_dimension_numbers<[1], [0], [0], [1], [0, 0, 1, 1], [], []>} : vector<8x128xf32>, vector<128x128xf32>, vector<8x128xf32> -> vector<8x128xf32>
      %35 = arith.addf %33, %34 : vector<8x128xf32>
      %36 = math.tanh %35 : vector<8x128xf32>
      %c1_22 = arith.constant 1 : index
      %c0_23 = arith.constant 0 : index
      %c0_24 = arith.constant 0 : index
      %37 = vector.load %arg6[%c1_22, %c0_23, %c0_24] : memref<8x8x128xf32, #tpu.memory_space<vmem>>, vector<1x8x128xf32>
      %38 = vector.shape_cast %37 : vector<1x8x128xf32> to vector<8x128xf32>
      %39 = vector.shape_cast %36 : vector<8x128xf32> to vector<1x8x128xf32>
      tpu.vector_store %arg6[%c1_22, %c0_23, %c0_24], %39 {strides = array<i32>} : memref<8x8x128xf32, #tpu.memory_space<vmem>>, vector<1x8x128xf32>,
      %40 = arith.index_cast %19 : i32 to index
      %c2 = arith.constant 2 : index
      %c0_25 = arith.constant 0 : index
      %c0_26 = arith.constant 0 : index
      %41 = vector.load %arg7[%40, %c2, %c0_25, %c0_26] : memref<2x8x8x128xf32, #tpu.memory_space<vmem>>, vector<1x1x8x128xf32>
      %42 = vector.shape_cast %41 : vector<1x1x8x128xf32> to vector<8x128xf32>
      %cst_27 = arith.constant dense<0.000000e+00> : vector<8x128xf32>
      %43 = tpu.matmul %36, %20, %cst_27 {dimension_numbers = #tpu.dot_dimension_numbers<[1], [0], [0], [1], [0, 0, 1, 1], [], []>} : vector<8x128xf32>, vector<128x128xf32>, vector<8x128xf32> -> vector<8x128xf32>
      %44 = arith.addf %42, %43 : vector<8x128xf32>
      %45 = math.tanh %44 : vector<8x128xf32>
      %c2_28 = arith.constant 2 : index
      %c0_29 = arith.constant 0 : index
      %c0_30 = arith.constant 0 : index
      %46 = vector.load %arg6[%c2_28, %c0_29, %c0_30] : memref<8x8x128xf32, #tpu.memory_space<vmem>>, vector<1x8x128xf32>
      %47 = vector.shape_cast %46 : vector<1x8x128xf32> to vector<8x128xf32>
      %48 = vector.shape_cast %45 : vector<8x128xf32> to vector<1x8x128xf32>
      tpu.vector_store %arg6[%c2_28, %c0_29, %c0_30], %48 {strides = array<i32>} : memref<8x8x128xf32, #tpu.memory_space<vmem>>, vector<1x8x128xf32>,
      %49 = arith.index_cast %19 : i32 to index
      %c3 = arith.constant 3 : index
      %c0_31 = arith.constant 0 : index
      %c0_32 = arith.constant 0 : index
      %50 = vector.load %arg7[%49, %c3, %c0_31, %c0_32] : memref<2x8x8x128xf32, #tpu.memory_space<vmem>>, vector<1x1x8x128xf32>
      %51 = vector.shape_cast %50 : vector<1x1x8x128xf32> to vector<8x128xf32>
      %cst_33 = arith.constant dense<0.000000e+00> : vector<8x128xf32>
      %52 = tpu.matmul %45, %20, %cst_33 {dimension_numbers = #tpu.dot_dimension_numbers<[1], [0], [0], [1], [0, 0, 1, 1], [], []>} : vector<8x128xf32>, vector<128x128xf32>, vector<8x128xf32> -> vector<8x128xf32>
      %53 = arith.addf %51, %52 : vector<8x128xf32>
      %54 = math.tanh %53 : vector<8x128xf32>
      %c3_34 = arith.constant 3 : index
      %c0_35 = arith.constant 0 : index
      %c0_36 = arith.constant 0 : index
      %55 = vector.load %arg6[%c3_34, %c0_35, %c0_36] : memref<8x8x128xf32, #tpu.memory_space<vmem>>, vector<1x8x128xf32>
      %56 = vector.shape_cast %55 : vector<1x8x128xf32> to vector<8x128xf32>
      %57 = vector.shape_cast %54 : vector<8x128xf32> to vector<1x8x128xf32>
      tpu.vector_store %arg6[%c3_34, %c0_35, %c0_36], %57 {strides = array<i32>} : memref<8x8x128xf32, #tpu.memory_space<vmem>>, vector<1x8x128xf32>,
      %58 = arith.index_cast %19 : i32 to index
      %c4 = arith.constant 4 : index
      %c0_37 = arith.constant 0 : index
      %c0_38 = arith.constant 0 : index
      %59 = vector.load %arg7[%58, %c4, %c0_37, %c0_38] : memref<2x8x8x128xf32, #tpu.memory_space<vmem>>, vector<1x1x8x128xf32>
      %60 = vector.shape_cast %59 : vector<1x1x8x128xf32> to vector<8x128xf32>
      %cst_39 = arith.constant dense<0.000000e+00> : vector<8x128xf32>
      %61 = tpu.matmul %54, %20, %cst_39 {dimension_numbers = #tpu.dot_dimension_numbers<[1], [0], [0], [1], [0, 0, 1, 1], [], []>} : vector<8x128xf32>, vector<128x128xf32>, vector<8x128xf32> -> vector<8x128xf32>
      %62 = arith.addf %60, %61 : vector<8x128xf32>
      %63 = math.tanh %62 : vector<8x128xf32>
      %c4_40 = arith.constant 4 : index
      %c0_41 = arith.constant 0 : index
      %c0_42 = arith.constant 0 : index
      %64 = vector.load %arg6[%c4_40, %c0_41, %c0_42] : memref<8x8x128xf32, #tpu.memory_space<vmem>>, vector<1x8x128xf32>
      %65 = vector.shape_cast %64 : vector<1x8x128xf32> to vector<8x128xf32>
      %66 = vector.shape_cast %63 : vector<8x128xf32> to vector<1x8x128xf32>
      tpu.vector_store %arg6[%c4_40, %c0_41, %c0_42], %66 {strides = array<i32>} : memref<8x8x128xf32, #tpu.memory_space<vmem>>, vector<1x8x128xf32>,
      %67 = arith.index_cast %19 : i32 to index
      %c5 = arith.constant 5 : index
      %c0_43 = arith.constant 0 : index
      %c0_44 = arith.constant 0 : index
      %68 = vector.load %arg7[%67, %c5, %c0_43, %c0_44] : memref<2x8x8x128xf32, #tpu.memory_space<vmem>>, vector<1x1x8x128xf32>
      %69 = vector.shape_cast %68 : vector<1x1x8x128xf32> to vector<8x128xf32>
      %cst_45 = arith.constant dense<0.000000e+00> : vector<8x128xf32>
      %70 = tpu.matmul %63, %20, %cst_45 {dimension_numbers = #tpu.dot_dimension_numbers<[1], [0], [0], [1], [0, 0, 1, 1], [], []>} : vector<8x128xf32>, vector<128x128xf32>, vector<8x128xf32> -> vector<8x128xf32>
      %71 = arith.addf %69, %70 : vector<8x128xf32>
      %72 = math.tanh %71 : vector<8x128xf32>
      %c5_46 = arith.constant 5 : index
      %c0_47 = arith.constant 0 : index
      %c0_48 = arith.constant 0 : index
      %73 = vector.load %arg6[%c5_46, %c0_47, %c0_48] : memref<8x8x128xf32, #tpu.memory_space<vmem>>, vector<1x8x128xf32>
      %74 = vector.shape_cast %73 : vector<1x8x128xf32> to vector<8x128xf32>
      %75 = vector.shape_cast %72 : vector<8x128xf32> to vector<1x8x128xf32>
      tpu.vector_store %arg6[%c5_46, %c0_47, %c0_48], %75 {strides = array<i32>} : memref<8x8x128xf32, #tpu.memory_space<vmem>>, vector<1x8x128xf32>,
      %76 = arith.index_cast %19 : i32 to index
      %c6 = arith.constant 6 : index
      %c0_49 = arith.constant 0 : index
      %c0_50 = arith.constant 0 : index
      %77 = vector.load %arg7[%76, %c6, %c0_49, %c0_50] : memref<2x8x8x128xf32, #tpu.memory_space<vmem>>, vector<1x1x8x128xf32>
      %78 = vector.shape_cast %77 : vector<1x1x8x128xf32> to vector<8x128xf32>
      %cst_51 = arith.constant dense<0.000000e+00> : vector<8x128xf32>
      %79 = tpu.matmul %72, %20, %cst_51 {dimension_numbers = #tpu.dot_dimension_numbers<[1], [0], [0], [1], [0, 0, 1, 1], [], []>} : vector<8x128xf32>, vector<128x128xf32>, vector<8x128xf32> -> vector<8x128xf32>
      %80 = arith.addf %78, %79 : vector<8x128xf32>
      %81 = math.tanh %80 : vector<8x128xf32>
      %c6_52 = arith.constant 6 : index
      %c0_53 = arith.constant 0 : index
      %c0_54 = arith.constant 0 : index
      %82 = vector.load %arg6[%c6_52, %c0_53, %c0_54] : memref<8x8x128xf32, #tpu.memory_space<vmem>>, vector<1x8x128xf32>
      %83 = vector.shape_cast %82 : vector<1x8x128xf32> to vector<8x128xf32>
      %84 = vector.shape_cast %81 : vector<8x128xf32> to vector<1x8x128xf32>
      tpu.vector_store %arg6[%c6_52, %c0_53, %c0_54], %84 {strides = array<i32>} : memref<8x8x128xf32, #tpu.memory_space<vmem>>, vector<1x8x128xf32>,
      %85 = arith.index_cast %19 : i32 to index
      %c7 = arith.constant 7 : index
      %c0_55 = arith.constant 0 : index
      %c0_56 = arith.constant 0 : index
      %86 = vector.load %arg7[%85, %c7, %c0_55, %c0_56] : memref<2x8x8x128xf32, #tpu.memory_space<vmem>>, vector<1x1x8x128xf32>
      %87 = vector.shape_cast %86 : vector<1x1x8x128xf32> to vector<8x128xf32>
      %cst_57 = arith.constant dense<0.000000e+00> : vector<8x128xf32>
      %88 = tpu.matmul %81, %20, %cst_57 {dimension_numbers = #tpu.dot_dimension_numbers<[1], [0], [0], [1], [0, 0, 1, 1], [], []>} : vector<8x128xf32>, vector<128x128xf32>, vector<8x128xf32> -> vector<8x128xf32>
      %89 = arith.addf %87, %88 : vector<8x128xf32>
      %90 = math.tanh %89 : vector<8x128xf32>
      %c7_58 = arith.constant 7 : index
      %c0_59 = arith.constant 0 : index
      %c0_60 = arith.constant 0 : index
      %91 = vector.load %arg6[%c7_58, %c0_59, %c0_60] : memref<8x8x128xf32, #tpu.memory_space<vmem>>, vector<1x8x128xf32>
      %92 = vector.shape_cast %91 : vector<1x8x128xf32> to vector<8x128xf32>
      %93 = vector.shape_cast %90 : vector<8x128xf32> to vector<1x8x128xf32>
      tpu.vector_store %arg6[%c7_58, %c0_59, %c0_60], %93 {strides = array<i32>} : memref<8x8x128xf32, #tpu.memory_space<vmem>>, vector<1x8x128xf32>,
      %c0_61 = arith.constant 0 : index
      %c0_62 = arith.constant 0 : index
      %94 = vector.load %arg8[%c0_61, %c0_62] : memref<8x128xf32, #tpu.memory_space<vmem>>, vector<8x128xf32>
      tpu.vector_store %arg8[%c0_61, %c0_62], %90 {strides = array<i32>} : memref<8x128xf32, #tpu.memory_space<vmem>>, vector<8x128xf32>,
    } else {
    }
    return
  }
  func.func @transform_0(%arg0: i32, %arg1: i32) -> (i32, i32, i32) {
    %c0_i32 = arith.constant 0 : i32
    %0 = arith.minsi %arg1, %c0_i32 : i32
    %c0_i32_0 = arith.constant 0 : i32
    %c0_i32_1 = arith.constant 0 : i32
    return %0, %arg0, %c0_i32_0 : i32, i32, i32
  }
  func.func @transform_1(%arg0: i32, %arg1: i32) -> (i32, i32) {
    %c0_i32 = arith.constant 0 : i32
    %c0_i32_0 = arith.constant 0 : i32
    %c0_i32_1 = arith.constant 0 : i32
    return %c0_i32, %c0_i32_0 : i32, i32
  }
  func.func @transform_2(%arg0: i32, %arg1: i32) -> (i32, i32) {
    %c0_i32 = arith.constant 0 : i32
    %c0_i32_0 = arith.constant 0 : i32
    %c0_i32_1 = arith.constant 0 : i32
    return %c0_i32, %c0_i32_0 : i32, i32
  }
  func.func @transform_3(%arg0: i32, %arg1: i32) -> (i32, i32) {
    %c0_i32 = arith.constant 0 : i32
    %c0_i32_0 = arith.constant 0 : i32
    %c0_i32_1 = arith.constant 0 : i32
    return %c0_i32, %c0_i32_0 : i32, i32
  }
  func.func @transform_4(%arg0: i32, %arg1: i32) -> (i32, i32, i32) {
    %c1_i32 = arith.constant 1 : i32
    %0 = arith.subi %arg1, %c1_i32 : i32
    %c0_i32 = arith.constant 0 : i32
    %1 = arith.maxsi %0, %c0_i32 : i32
    %c0_i32_0 = arith.constant 0 : i32
    %c0_i32_1 = arith.constant 0 : i32
    return %1, %arg0, %c0_i32_0 : i32, i32, i32
  }
}

</mosaic_0001>

<llo_original>
// kernel: tpu_custom_call.1
$region0: #{tpu_custom_call.1}
  #allocation0 [shape = 'u32[]', space=smem, size = 0x4, offset = 0x4, fixed_abs, tag = 'smem constant byte address 0x4 - core index']
  #allocation1 [shape = 'u32[72,128]{1,0:T(1,128)}', space=vmem, size = 0x9000, scoped, tag = 'internal scratch']
  #allocation2 [shape = 'f32[2,8,8,128]{3,2,1,0:T(8,128)}', space=vmem, size = 0x10000, scoped, tag = 'scratch operand']
  #allocation3 [shape = 'f32[8,128]{1,0:T(8,128)}', space=vmem, size = 0x1000, scoped, tag = 'scratch operand']
  %s0 = inlined_call_operand.hbm [shape: f32[8,8,8], index: 0, kind: input, shape index: {}]
  %s1 = inlined_call_operand.hbm [shape: f32[8,128], index: 1, kind: input, shape index: {}]
  %s2 = inlined_call_operand.vmem [shape: f32[1,128], index: 2, kind: input, shape index: {}]
  %s3 = inlined_call_operand.hbm [shape: f32[128,128], index: 3, kind: input, shape index: {}]
  %s4 = inlined_call_operand.hbm [shape: f32[8,8,128], index: 4, kind: output, shape index: {}]
  %s5 = sld [smem:[#allocation0]]
  $region73: #{tpu_custom_call.1} parent=0
    _
  %s7 = ssub.s32 1, %s5
  %s8 = scalar_select 0, %s7, %s5
  $region1: #{tpu_custom_call.1} parent=0
    #allocation4 [shape = 'u8[65536]{0}', space=vmem, size = 0x10000, scoped, tag = 'input window, operand 0']
    #allocation5 [shape = 's32[2]{0}', space=sflag, size = 0x8, scoped, tag = 'scoped memory for tpu_custom_call.1']
    #allocation6 [shape = 's32[2]{0}', space=sflag, size = 0x8, scoped, tag = 'scoped memory for tpu_custom_call.1']
    #allocation7 [shape = 'u8[4096]{0}', space=vmem, size = 0x1000, scoped, tag = 'input window, operand 1, single buffered']
    #allocation8 [shape = 's32[1]{0}', space=sflag, size = 0x4, scoped, tag = 'scoped memory for tpu_custom_call.1']
    #allocation9 [shape = 'u8[65536]{0}', space=vmem, size = 0x10000, scoped, tag = 'input window, operand 3, single buffered']
    #allocation10 [shape = 'u8[65536]{0}', space=vmem, size = 0x10000, scoped, tag = 'output window, operand 0']
    %9 = vsyncpa [#allocation5], 0
    %s10 = scalar_lea.sflag [#allocation5], 1
    %11 = vsyncpa %s10, 0
    %12 = vsyncpa [#allocation8], 0
    %13 = vsyncpa [#allocation6], 0
    %s14 = scalar_lea.sflag [#allocation6], 1
    %15 = vsyncpa %s14, 0
    loop: start=0, step=1, limit=4
    $region2: #{tpu_custom_call.1} parent=1 // loop_pre_header
      _
    $region3: #{tpu_custom_call.1} parent=1 // loop_header
      %s17 = sphi 0, %s21
      %p18 = scmp.ge.s32.totalorder %s17, 4
      %s24 = sphi 0, %s36
      %s25 = sphi 0, %s32
      %s26 = sphi 0, %s24
      %s27 = sphi 0, %s25
      %s28 = sphi 0, %s26
      %s29 = sphi 0, %s27
      %s45 = sphi 0, %s47
      %s48 = sphi 0, %s45
      %s49 = sphi 0, %s48
      %s65 = sphi 0, %s49
      %s69 = sphi 0, %s69
      %s71 = sphi 0, %s69
      %s72 = sphi 0, %s71
      %s86 = sphi 0, %s72
      %s90 = sphi 0, %s90
      %s92 = sphi 0, %s90
      %s93 = sphi 0, %s92
      %s107 = sphi 0, %s93
      %s111 = sphi 0, %s111
      %s113 = sphi 0, %s111
      %s114 = sphi 0, %s113
      %s128 = sphi 0, %s114
      %s142 = sphi 0, %s144
      %s145 = sphi 0, %s142
      %s146 = sphi 0, %s145
      %s162 = sphi 0, %s146
    $region4: #{tpu_custom_call.1} parent=1 // loop_header_branch
      %20 = sbr.rel (%p18) target = $region8
    $region5: #{tpu_custom_call.1} parent=1 // loop_body
      %s22 = ssub.s32 %s17, 1
      %s23 = ssub.s32 %s17, 2
      %s30 = sadd.s32 1, %s25
      %p31 = scmp.ge.s32.totalorder %s30, 2
      %s32 = scalar_select %p31, 0, %s30
      %s33 = sadd.s32 1, %s24
      %s34 = scalar_select %p31, %s33, %s24
      %p35 = scmp.ge.s32.totalorder %s34, 1
      %s36 = scalar_select %p35, 0, %s34
      %p37 = scmp.lt.s32.totalorder %s25, 0
      %s38 = scalar_select %p37, %s25, 0
      %p39 = scmp.lt.s32.totalorder %s32, 0
      %s40 = scalar_select %p39, %s32, 0
      %s41 = ssub.s32 %s38, %s40
      %s42 = ssub.s32 %s24, %s36
      %s43 = sor.u32 %s41, %s42
      %p44 = scmp.eq.s32.totalorder %s43, 0
      %s46 = sadd.s32 %s45, 1
      %s47 = scalar_select %p44, %s45, %s46
      %p50 = pneg %p44
      %p51 = scmp.eq.s32.totalorder %s17, 1
      %p52 = por %p50, %p51
      %p53 = scmp.ne.s32.totalorder %s45, %s48
      %p54 = scmp.eq.s32.totalorder %s17, 0
      %p55 = por %p53, %p54
      %p56 = scmp.ne.s32.totalorder %s45, %s48
      %p57 = scmp.eq.s32.totalorder %s22, 1
      %p58 = por %p56, %p57
      %p59 = scmp.ne.s32.totalorder %s48, %s49
      %p60 = scmp.eq.s32.totalorder %s22, 0
      %p61 = por %p59, %p60
      %p62 = scmp.ne.s32.totalorder %s48, %s49
      %p63 = scmp.eq.s32.totalorder %s23, 1
      %p64 = por %p62, %p63
      %p66 = scmp.ne.s32.totalorder %s49, %s65
      %p67 = scmp.eq.s32.totalorder %s23, 0
      %p68 = por %p66, %p67
      %s70 = sadd.s32 %s69, 1
      %p73 = scmp.eq.s32.totalorder %s17, 1
      %p74 = scmp.ne.s32.totalorder %s69, %s71
      %p75 = scmp.eq.s32.totalorder %s17, 0
      %p76 = por %p74, %p75
      %p77 = scmp.ne.s32.totalorder %s69, %s71
      %p78 = scmp.eq.s32.totalorder %s22, 1
      %p79 = por %p77, %p78
      %p80 = scmp.ne.s32.totalorder %s71, %s72
      %p81 = scmp.eq.s32.totalorder %s22, 0
      %p82 = por %p80, %p81
      %p83 = scmp.ne.s32.totalorder %s71, %s72
      %p84 = scmp.eq.s32.totalorder %s23, 1
      %p85 = por %p83, %p84
      %p87 = scmp.ne.s32.totalorder %s72, %s86
      %p88 = scmp.eq.s32.totalorder %s23, 0
      %p89 = por %p87, %p88
      %s91 = sadd.s32 %s90, 1
      %p94 = scmp.eq.s32.totalorder %s17, 1
      %p95 = scmp.ne.s32.totalorder %s90, %s92
      %p96 = scmp.eq.s32.totalorder %s17, 0
      %p97 = por %p95, %p96
      %p98 = scmp.ne.s32.totalorder %s90, %s92
      %p99 = scmp.eq.s32.totalorder %s22, 1
      %p100 = por %p98, %p99
      %p101 = scmp.ne.s32.totalorder %s92, %s93
      %p102 = scmp.eq.s32.totalorder %s22, 0
      %p103 = por %p101, %p102
      %p104 = scmp.ne.s32.totalorder %s92, %s93
      %p105 = scmp.eq.s32.totalorder %s23, 1
      %p106 = por %p104, %p105
      %p108 = scmp.ne.s32.totalorder %s93, %s107
      %p109 = scmp.eq.s32.totalorder %s23, 0
      %p110 = por %p108, %p109
      %s112 = sadd.s32 %s111, 1
      %p115 = scmp.eq.s32.totalorder %s17, 1
      %p116 = scmp.ne.s32.totalorder %s111, %s113
      %p117 = scmp.eq.s32.totalorder %s17, 0
      %p118 = por %p116, %p117
      %p119 = scmp.ne.s32.totalorder %s111, %s113
      %p120 = scmp.eq.s32.totalorder %s22, 1
      %p121 = por %p119, %p120
      %p122 = scmp.ne.s32.totalorder %s113, %s114
      %p123 = scmp.eq.s32.totalorder %s22, 0
      %p124 = por %p122, %p123
      %p125 = scmp.ne.s32.totalorder %s113, %s114
      %p126 = scmp.eq.s32.totalorder %s23, 1
      %p127 = por %p125, %p126
      %p129 = scmp.ne.s32.totalorder %s114, %s128
      %p130 = scmp.eq.s32.totalorder %s23, 0
      %p131 = por %p129, %p130
      %s132 = ssub.s32 %s25, 1
      %p133 = scmp.gt.s32.totalorder %s132, 0
      %s134 = scalar_select %p133, %s132, 0
      %s135 = ssub.s32 %s32, 1
      %p136 = scmp.gt.s32.totalorder %s135, 0
      %s137 = scalar_select %p136, %s135, 0
      %s138 = ssub.s32 %s134, %s137
      %s139 = ssub.s32 %s24, %s36
      %s140 = sor.u32 %s138, %s139
      %p141 = scmp.eq.s32.totalorder %s140, 0
      %s143 = sadd.s32 %s142, 1
      %s144 = scalar_select %p141, %s142, %s143
      %p147 = pneg %p141
      %p148 = scmp.eq.s32.totalorder %s17, 1
      %p149 = por %p147, %p148
      %p150 = scmp.ne.s32.totalorder %s142, %s145
      %p151 = scmp.eq.s32.totalorder %s17, 0
      %p152 = por %p150, %p151
      %p153 = scmp.ne.s32.totalorder %s142, %s145
      %p154 = scmp.eq.s32.totalorder %s22, 1
      %p155 = por %p153, %p154
      %p156 = scmp.ne.s32.totalorder %s145, %s146
      %p157 = scmp.eq.s32.totalorder %s22, 0
      %p158 = por %p156, %p157
      %p159 = scmp.ne.s32.totalorder %s145, %s146
      %p160 = scmp.eq.s32.totalorder %s23, 1
      %p161 = por %p159, %p160
      %p163 = scmp.ne.s32.totalorder %s146, %s162
      %p164 = scmp.eq.s32.totalorder %s23, 0
      %p165 = por %p163, %p164
      %p166 = scmp.le.s32.totalorder 1, %s17
      %p167 = scmp.lt.s32.totalorder %s17, 3
      %p168 = pnand %p166, %p167
      %p169 = pneg %p168
      // Predicated region
      $region9: #{tpu_custom_call.1} parent=5 // pred_check
        _
      $region10: #{tpu_custom_call.1} parent=5 // pred_check_branch
        %171 = sbr.rel (%p168) target = $region12
      $region11: #{tpu_custom_call.1} parent=5 // pred_region
        %s172 = ssub.s32 %s17, 1
        // Predicated region
        $region13: #{tpu_custom_call.1} parent=11 // pred_check
          %p173 = pneg %p82
        $region14: #{tpu_custom_call.1} parent=11 // pred_check_branch
          %175 = sbr.rel (%p173) target = $region16
        $region15: #{tpu_custom_call.1} parent=11 // pred_region
          %177 = vsyncadd [#allocation8], 0
          %s179 = sshll.u32 %s1, 4
          %s180 = int_to_ptr.hbm [resolvable:$true] %s179
          %s181 = sshll.u32 [#allocation7], 4
          %s182 = int_to_ptr.vmem [resolvable:$true] %s181
          %184 = dma.hbm_to_vmem [thread:$0]  %s180, 128, %s182, [#allocation8]
        $region16: #{tpu_custom_call.1} parent=11 // pred_fallthru
          _
        // Predicated region
        $region17: #{tpu_custom_call.1} parent=11 // pred_check
          %p185 = pneg %p103
        $region18: #{tpu_custom_call.1} parent=11 // pred_check_branch
          %187 = sbr.rel (%p185) target = $region20
        $region19: #{tpu_custom_call.1} parent=11 // pred_region
          _
        $region20: #{tpu_custom_call.1} parent=11 // pred_fallthru
          _
        // Predicated region
        $region21: #{tpu_custom_call.1} parent=11 // pred_check
          %p188 = pneg %p124
        $region22: #{tpu_custom_call.1} parent=11 // pred_check_branch
          %190 = sbr.rel (%p188) target = $region24
        $region23: #{tpu_custom_call.1} parent=11 // pred_region
          %192 = vsyncadd [#allocation8], 0
          %s193 = sshll.u32 %s3, 4
          %s194 = int_to_ptr.hbm [resolvable:$true] %s193
          %s195 = sshll.u32 [#allocation9], 4
          %s196 = int_to_ptr.vmem [resolvable:$true] %s195
          %201 = dma.hbm_to_vmem [thread:$0]  %s194, 2048, %s196, [#allocation8], 128, 128, 8
        $region24: #{tpu_custom_call.1} parent=11 // pred_fallthru
          _
      $region12: #{tpu_custom_call.1} parent=5 // pred_fallthru
        _
      %p202 = scmp.lt.s32.totalorder %s17, 2
      // Predicated region
      $region25: #{tpu_custom_call.1} parent=5 // pred_check
        %p203 = pneg %p202
      $region26: #{tpu_custom_call.1} parent=5 // pred_check_branch
        %205 = sbr.rel (%p203) target = $region28
      $region27: #{tpu_custom_call.1} parent=5 // pred_region
        // Predicated region
        $region29: #{tpu_custom_call.1} parent=27 // pred_check
          %p206 = pneg %p55
        $region30: #{tpu_custom_call.1} parent=27 // pred_check_branch
          %208 = sbr.rel (%p206) target = $region32
        $region31: #{tpu_custom_call.1} parent=27 // pred_region
          %s209 = sand.u32 %s45, 1
          %s210 = scalar_lea.sflag [#allocation5], %s209
          %s211 = sand.u32 %s45, 1
          %s212 = smul.addr %s211, 64
          %s213 = scalar_lea.vmem [#allocation4], %s212
          %p214 = scmp.lt.s32.totalorder %s25, 0
          %s215 = scalar_select %p214, %s25, 0
          %s216 = smul.u32 8, %s215
          %218 = vsyncadd %s210, 0
          %s219 = sadd.s32 %s24, %s216
          %s220 = smul.addr %s219, 8
          %s221 = scalar_lea.hbm %s0, %s220
          %s222 = sshll.u32 %s221, 4
          %s223 = int_to_ptr.hbm [resolvable:$true] %s222
          %s224 = sshll.u32 %s213, 4
          %s225 = int_to_ptr.vmem [resolvable:$true] %s224
          %230 = dma.hbm_to_vmem [thread:$0]  %s223, 1024, %s225, %s210, 128, 128, 8
        $region32: #{tpu_custom_call.1} parent=27 // pred_fallthru
          _
      $region28: #{tpu_custom_call.1} parent=5 // pred_fallthru
        _
      %p231 = scmp.le.s32.totalorder 1, %s17
      %p232 = scmp.lt.s32.totalorder %s17, 3
      %p233 = pnand %p231, %p232
      %p234 = pneg %p233
      // Predicated region
      $region33: #{tpu_custom_call.1} parent=5 // pred_check
        _
      $region34: #{tpu_custom_call.1} parent=5 // pred_check_branch
        %236 = sbr.rel (%p233) target = $region36
      $region35: #{tpu_custom_call.1} parent=5 // pred_region
        %s237 = ssub.s32 %s17, 1
        %s238 = sand.u32 %s48, 1
        %s239 = scalar_lea.sflag [#allocation5], %s238
        %s240 = sand.u32 %s48, 1
        %s241 = smul.addr %s240, 64
        %s242 = scalar_lea.vmem [#allocation4], %s241
        // Predicated region
        $region37: #{tpu_custom_call.1} parent=35 // pred_check
          %p243 = pneg %p61
        $region38: #{tpu_custom_call.1} parent=35 // pred_check_branch
          %245 = sbr.rel (%p243) target = $region40
        $region39: #{tpu_custom_call.1} parent=35 // pred_region
          %247 = dma.done %s239, 1024
        $region40: #{tpu_custom_call.1} parent=35 // pred_fallthru
          _
        // Predicated region
        $region41: #{tpu_custom_call.1} parent=35 // pred_check
          %p248 = pneg %p82
        $region42: #{tpu_custom_call.1} parent=35 // pred_check_branch
          %250 = sbr.rel (%p248) target = $region44
        $region43: #{tpu_custom_call.1} parent=35 // pred_region
          %252 = dma.done [#allocation8], 128
        $region44: #{tpu_custom_call.1} parent=35 // pred_fallthru
          _
        // Predicated region
        $region45: #{tpu_custom_call.1} parent=35 // pred_check
          %p253 = pneg %p124
        $region46: #{tpu_custom_call.1} parent=35 // pred_check_branch
          %255 = sbr.rel (%p253) target = $region48
        $region47: #{tpu_custom_call.1} parent=35 // pred_region
          %257 = dma.done [#allocation8], 2048
        $region48: #{tpu_custom_call.1} parent=35 // pred_fallthru
          _
        %s258 = sand.u32 %s48, 1
        %s259 = scalar_lea.sflag [#allocation5], %s258
        %s260 = sand.u32 %s48, 1
        %s261 = smul.addr %s260, 64
        %s262 = scalar_lea.vmem [#allocation4], %s261
        %p263 = pneg %p61
        %p264 = pneg %p58
        %p265 = pneg %p82
        %p266 = pneg %p79
        %p267 = pneg %p103
        %p268 = pneg %p100
        %p269 = pneg %p124
        %p270 = pneg %p121
        %p271 = pneg %p158
        %p272 = pneg %p155
        %s273 = sand.u32 %s145, 1
        %s274 = scalar_lea.sflag [#allocation6], %s273
        %s275 = sand.u32 %s145, 1
        %s276 = smul.addr %s275, 64
        %s277 = scalar_lea.vmem [#allocation10], %s276
        %p278 = scmp.lt.s32.totalorder %s27, 0
        %s279 = scalar_select %p278, %s27, 0
        %s280 = smul.u32 8, %s279
        %s281 = ssub.s32 %s27, 1
        %p282 = scmp.gt.s32.totalorder %s281, 0
        %s283 = scalar_select %p282, %s281, 0
        %s284 = smul.u32 8, %s283
        %p285 = scmp.eq.s32.totalorder %s27, 0
        // Predicated region
        $region49: #{tpu_custom_call.1} parent=35 // pred_check
          %p286 = pneg %p285
        $region50: #{tpu_custom_call.1} parent=35 // pred_check_branch
          %288 = sbr.rel (%p286) target = $region52
        $region51: #{tpu_custom_call.1} parent=35 // pred_region
          %289 = vst [vmem:[#allocation3] sm:$0xff] 0.0
        $region52: #{tpu_custom_call.1} parent=35 // pred_fallthru
          _
        %p290 = scmp.lt.s32.totalorder %s27, 1
        // Predicated region
        $region53: #{tpu_custom_call.1} parent=35 // pred_check
          %p291 = pneg %p290
        $region54: #{tpu_custom_call.1} parent=35 // pred_check_branch
          %293 = sbr.rel (%p291) target = $region56
        $region55: #{tpu_custom_call.1} parent=35 // pred_region
          %p294 = scmp.lt.s32.totalorder %s27, 0
          %s295 = ssub.s32 0, %s27
          %s296 = scalar_select %p294, %s295, %s27
          %s297 = sand.u32 %s296, 1
          %s298 = ssub.s32 0, %s297
          %s299 = scalar_select %p294, %s298, %s297
          %p300 = scmp.ne.s32.totalorder %s299, 0
          %p301 = scmp.lt.s32.totalorder %s299, 0
          %p302 = pnand %p301, %p300
          %p303 = pneg %p302
          %s304 = sadd.s32 %s299, 2
          %s305 = scalar_select %p303, %s304, %s299
          %v306 = vld [vmem:[%s242] sm:$0xff]
          %v307 = vld [vmem:[%s242 + $0x8] sm:$0xff]
          %v308 = vld [vmem:[%s242 + $0x10] sm:$0xff]
          %v309 = vld [vmem:[%s242 + $0x18] sm:$0xff]
          %v310 = vld [vmem:[%s242 + $0x20] sm:$0xff]
          %v311 = vld [vmem:[%s242 + $0x28] sm:$0xff]
          %v312 = vld [vmem:[%s242 + $0x30] sm:$0xff]
          %v313 = vld [vmem:[%s242 + $0x38] sm:$0xff]
          %v314 = vld [vmem:[#allocation7] sm:$0xff]
          %v315 = vld [vmem:[%s2] sm:$0x1]
          %v317 = vperm.slane %v315, 0
          %vm319 = vcmask 64512
          %v321 = vsel %vm319, %v306, 0
          %v324 = vsel %vm319, %v307, 0
          %v327 = vsel %vm319, %v308, 0
          %v330 = vsel %vm319, %v309, 0
          %v333 = vsel %vm319, %v310, 0
          %v336 = vsel %vm319, %v311, 0
          %v339 = vsel %vm319, %v312, 0
          %v342 = vsel %vm319, %v313, 0
          %344 = vmatpush.msra.mxu0 0.0
          %345 = vmatpush.msra.mxu0 0.0
          %346 = vmatpush.msra.mxu0 0.0
          %347 = vmatpush.msra.mxu0 0.0
          %348 = vmatpush.msra.mxu0 0.0
          %349 = vmatpush.msra.mxu0 0.0
          %350 = vmatpush.msra.mxu0 0.0
          %351 = vmatpush.msra.mxu0 0.0
          %352 = vmatpush.msra.mxu0 0.0
          %353 = vmatpush.msra.mxu0 0.0
          %354 = vmatpush.msra.mxu0 0.0
          %355 = vmatpush.msra.mxu0 0.0
          %356 = vmatpush.msra.mxu0 0.0
          %357 = vmatpush.msra.mxu0 0.0
          %358 = vmatpush.msra.mxu0 0.0
          %359 = vmatpush.msra.mxu0 %v314
          %360 = vmatmul.f32.gmra.mxu0 %v321
          %v361 = vpop.f32.mrf.mxu0
          %v362 = vadd.f32 %v317, %v361
          %363 = vmatmul.f32.gmra.mxu0 %v324
          %v364 = vpop.f32.mrf.mxu0
          %v365 = vadd.f32 %v317, %v364
          %366 = vmatmul.f32.gmra.mxu0 %v327
          %v367 = vpop.f32.mrf.mxu0
          %v368 = vadd.f32 %v317, %v367
          %369 = vmatmul.f32.gmra.mxu0 %v330
          %v370 = vpop.f32.mrf.mxu0
          %v371 = vadd.f32 %v317, %v370
          %372 = vmatmul.f32.gmra.mxu0 %v333
          %v373 = vpop.f32.mrf.mxu0
          %v374 = vadd.f32 %v317, %v373
          %375 = vmatmul.f32.gmra.mxu0 %v336
          %v376 = vpop.f32.mrf.mxu0
          %v377 = vadd.f32 %v317, %v376
          %378 = vmatmul.f32.gmra.mxu0 %v339
          %v379 = vpop.f32.mrf.mxu0
          %v380 = vadd.f32 %v317, %v379
          %381 = vmatmul.f32.gmra.mxu0 %v342
          %v382 = vpop.f32.mrf.mxu0
          %v383 = vadd.f32 %v317, %v382
          %384 = vdwg.mxu0
          %s385 = smul.u32 %s305, 64
          %s386 = scalar_lea.vmem [#allocation2], %s385
          %387 = vst [vmem:[%s386] sm:$0xff] %v362
          %388 = vst [vmem:[%s386 + $0x8] sm:$0xff] %v365
          %389 = vst [vmem:[%s386 + $0x10] sm:$0xff] %v368
          %390 = vst [vmem:[%s386 + $0x18] sm:$0xff] %v371
          %391 = vst [vmem:[%s386 + $0x20] sm:$0xff] %v374
          %392 = vst [vmem:[%s386 + $0x28] sm:$0xff] %v377
          %393 = vst [vmem:[%s386 + $0x30] sm:$0xff] %v380
          %394 = vst [vmem:[%s386 + $0x38] sm:$0xff] %v383
        $region56: #{tpu_custom_call.1} parent=35 // pred_fallthru
          _
        %p395 = scmp.gt.s32.totalorder %s27, 0
        // Predicated region
        $region57: #{tpu_custom_call.1} parent=35 // pred_check
          %p396 = pneg %p395
        $region58: #{tpu_custom_call.1} parent=35 // pred_check_branch
          %398 = sbr.rel (%p396) target = $region60
        $region59: #{tpu_custom_call.1} parent=35 // pred_region
          %s399 = sadd.s32 %s27, 1
          %p400 = scmp.lt.s32.totalorder %s399, 0
          %s401 = ssub.s32 0, %s399
          %s402 = scalar_select %p400, %s401, %s399
          %s403 = sand.u32 %s402, 1
          %s404 = ssub.s32 0, %s403
          %s405 = scalar_select %p400, %s404, %s403
          %p406 = scmp.ne.s32.totalorder %s405, 0
          %p407 = scmp.lt.s32.totalorder %s405, 0
          %p408 = pnand %p407, %p406
          %p409 = pneg %p408
          %s410 = sadd.s32 %s405, 2
          %s411 = scalar_select %p409, %s410, %s405
          %v412 = vld [vmem:[#allocation9] sm:$0xff]
          %v413 = vld [vmem:[#allocation9 + $0x8] sm:$0xff]
          %v414 = vld [vmem:[#allocation9 + $0x10] sm:$0xff]
          %v415 = vld [vmem:[#allocation9 + $0x18] sm:$0xff]
          %v416 = vld [vmem:[#allocation9 + $0x20] sm:$0xff]
          %v417 = vld [vmem:[#allocation9 + $0x28] sm:$0xff]
          %v418 = vld [vmem:[#allocation9 + $0x30] sm:$0xff]
          %v419 = vld [vmem:[#allocation9 + $0x38] sm:$0xff]
          %v420 = vld [vmem:[#allocation9 + $0x40] sm:$0xff]
          %v421 = vld [vmem:[#allocation9 + $0x48] sm:$0xff]
          %v422 = vld [vmem:[#allocation9 + $0x50] sm:$0xff]
          %v423 = vld [vmem:[#allocation9 + $0x58] sm:$0xff]
          %v424 = vld [vmem:[#allocation9 + $0x60] sm:$0xff]
          %v425 = vld [vmem:[#allocation9 + $0x68] sm:$0xff]
          %v426 = vld [vmem:[#allocation9 + $0x70] sm:$0xff]
          %v427 = vld [vmem:[#allocation9 + $0x78] sm:$0xff]
          %v428 = vld [vmem:[#allocation3] sm:$0xff]
          %s429 = smul.u32 %s411, 64
          %s430 = scalar_lea.vmem [#allocation2], %s429
          %v431 = vld [vmem:[%s430] sm:$0xff]
          %432 = vmatpush.msra.mxu0 %v427
          %433 = vmatpush.msra.mxu0 %v426
          %434 = vmatpush.msra.mxu0 %v425
          %435 = vmatpush.msra.mxu0 %v424
          %436 = vmatpush.msra.mxu0 %v423
          %437 = vmatpush.msra.mxu0 %v422
          %438 = vmatpush.msra.mxu0 %v421
          %439 = vmatpush.msra.mxu0 %v420
          %440 = vmatpush.msra.mxu0 %v419
          %441 = vmatpush.msra.mxu0 %v418
          %442 = vmatpush.msra.mxu0 %v417
          %443 = vmatpush.msra.mxu0 %v416
          %444 = vmatpush.msra.mxu0 %v415
          %445 = vmatpush.msra.mxu0 %v414
          %446 = vmatpush.msra.mxu0 %v413
          %447 = vmatpush.msra.mxu0 %v412
          %448 = vmatmul.f32.gmra.mxu0 %v428
          %v449 = vpop.f32.mrf.mxu0
          %v450 = vadd.f32 0.0, %v449
          %451 = vdwg.mxu0
          %v452 = vadd.f32 %v431, %v450
          %v453 = vtanh.pop %v452
          %454 = vst [vmem:[%s277] sm:$0xff] %v453
          %s455 = sadd.s32 8, %s429
          %s456 = scalar_lea.vmem [#allocation2], %s455
          %v457 = vld [vmem:[%s456] sm:$0xff]
          %458 = vmatpush.msra.mxu0 %v427
          %459 = vmatpush.msra.mxu0 %v426
          %460 = vmatpush.msra.mxu0 %v425
          %461 = vmatpush.msra.mxu0 %v424
          %462 = vmatpush.msra.mxu0 %v423
          %463 = vmatpush.msra.mxu0 %v422
          %464 = vmatpush.msra.mxu0 %v421
          %465 = vmatpush.msra.mxu0 %v420
          %466 = vmatpush.msra.mxu0 %v419
          %467 = vmatpush.msra.mxu0 %v418
          %468 = vmatpush.msra.mxu0 %v417
          %469 = vmatpush.msra.mxu0 %v416
          %470 = vmatpush.msra.mxu0 %v415
          %471 = vmatpush.msra.mxu0 %v414
          %472 = vmatpush.msra.mxu0 %v413
          %473 = vmatpush.msra.mxu0 %v412
          %474 = vmatmul.f32.gmra.mxu0 %v453
          %v475 = vpop.f32.mrf.mxu0
          %v476 = vadd.f32 0.0, %v475
          %477 = vdwg.mxu0
          %v478 = vadd.f32 %v457, %v476
          %v479 = vtanh.pop %v478
          %s480 = scalar_lea.vmem %s277, 8 [#allocation10]
          %481 = vst [vmem:[%s480] sm:$0xff] %v479
          %s482 = sadd.s32 16, %s429
          %s483 = scalar_lea.vmem [#allocation2], %s482
          %v484 = vld [vmem:[%s483] sm:$0xff]
          %485 = vmatpush.msra.mxu0 %v427
          %486 = vmatpush.msra.mxu0 %v426
          %487 = vmatpush.msra.mxu0 %v425
          %488 = vmatpush.msra.mxu0 %v424
          %489 = vmatpush.msra.mxu0 %v423
          %490 = vmatpush.msra.mxu0 %v422
          %491 = vmatpush.msra.mxu0 %v421
          %492 = vmatpush.msra.mxu0 %v420
          %493 = vmatpush.msra.mxu0 %v419
          %494 = vmatpush.msra.mxu0 %v418
          %495 = vmatpush.msra.mxu0 %v417
          %496 = vmatpush.msra.mxu0 %v416
          %497 = vmatpush.msra.mxu0 %v415
          %498 = vmatpush.msra.mxu0 %v414
          %499 = vmatpush.msra.mxu0 %v413
          %500 = vmatpush.msra.mxu0 %v412
          %501 = vmatmul.f32.gmra.mxu0 %v479
          %v502 = vpop.f32.mrf.mxu0
          %v503 = vadd.f32 0.0, %v502
          %504 = vdwg.mxu0
          %v505 = vadd.f32 %v484, %v503
          %v506 = vtanh.pop %v505
          %s507 = scalar_lea.vmem %s277, 16 [#allocation10]
          %508 = vst [vmem:[%s507] sm:$0xff] %v506
          %s509 = sadd.s32 24, %s429
          %s510 = scalar_lea.vmem [#allocation2], %s509
          %v511 = vld [vmem:[%s510] sm:$0xff]
          %512 = vmatpush.msra.mxu0 %v427
          %513 = vmatpush.msra.mxu0 %v426
          %514 = vmatpush.msra.mxu0 %v425
          %515 = vmatpush.msra.mxu0 %v424
          %516 = vmatpush.msra.mxu0 %v423
          %517 = vmatpush.msra.mxu0 %v422
          %518 = vmatpush.msra.mxu0 %v421
          %519 = vmatpush.msra.mxu0 %v420
          %520 = vmatpush.msra.mxu0 %v419
          %521 = vmatpush.msra.mxu0 %v418
          %522 = vmatpush.msra.mxu0 %v417
          %523 = vmatpush.msra.mxu0 %v416
          %524 = vmatpush.msra.mxu0 %v415
          %525 = vmatpush.msra.mxu0 %v414
          %526 = vmatpush.msra.mxu0 %v413
          %527 = vmatpush.msra.mxu0 %v412
          %528 = vmatmul.f32.gmra.mxu0 %v506
          %v529 = vpop.f32.mrf.mxu0
          %v530 = vadd.f32 0.0, %v529
          %531 = vdwg.mxu0
          %v532 = vadd.f32 %v511, %v530
          %v533 = vtanh.pop %v532
          %s534 = scalar_lea.vmem %s277, 24 [#allocation10]
          %535 = vst [vmem:[%s534] sm:$0xff] %v533
          %s536 = sadd.s32 32, %s429
          %s537 = scalar_lea.vmem [#allocation2], %s536
          %v538 = vld [vmem:[%s537] sm:$0xff]
          %539 = vmatpush.msra.mxu0 %v427
          %540 = vmatpush.msra.mxu0 %v426
          %541 = vmatpush.msra.mxu0 %v425
          %542 = vmatpush.msra.mxu0 %v424
          %543 = vmatpush.msra.mxu0 %v423
          %544 = vmatpush.msra.mxu0 %v422
          %545 = vmatpush.msra.mxu0 %v421
          %546 = vmatpush.msra.mxu0 %v420
          %547 = vmatpush.msra.mxu0 %v419
          %548 = vmatpush.msra.mxu0 %v418
          %549 = vmatpush.msra.mxu0 %v417
          %550 = vmatpush.msra.mxu0 %v416
          %551 = vmatpush.msra.mxu0 %v415
          %552 = vmatpush.msra.mxu0 %v414
          %553 = vmatpush.msra.mxu0 %v413
          %554 = vmatpush.msra.mxu0 %v412
          %555 = vmatmul.f32.gmra.mxu0 %v533
          %v556 = vpop.f32.mrf.mxu0
          %v557 = vadd.f32 0.0, %v556
          %558 = vdwg.mxu0
          %v559 = vadd.f32 %v538, %v557
          %v560 = vtanh.pop %v559
          %s561 = scalar_lea.vmem %s277, 32 [#allocation10]
          %562 = vst [vmem:[%s561] sm:$0xff] %v560
          %s563 = sadd.s32 40, %s429
          %s564 = scalar_lea.vmem [#allocation2], %s563
          %v565 = vld [vmem:[%s564] sm:$0xff]
          %566 = vmatpush.msra.mxu0 %v427
          %567 = vmatpush.msra.mxu0 %v426
          %568 = vmatpush.msra.mxu0 %v425
          %569 = vmatpush.msra.mxu0 %v424
          %570 = vmatpush.msra.mxu0 %v423
          %571 = vmatpush.msra.mxu0 %v422
          %572 = vmatpush.msra.mxu0 %v421
          %573 = vmatpush.msra.mxu0 %v420
          %574 = vmatpush.msra.mxu0 %v419
          %575 = vmatpush.msra.mxu0 %v418
          %576 = vmatpush.msra.mxu0 %v417
          %577 = vmatpush.msra.mxu0 %v416
          %578 = vmatpush.msra.mxu0 %v415
          %579 = vmatpush.msra.mxu0 %v414
          %580 = vmatpush.msra.mxu0 %v413
          %581 = vmatpush.msra.mxu0 %v412
          %582 = vmatmul.f32.gmra.mxu0 %v560
          %v583 = vpop.f32.mrf.mxu0
          %v584 = vadd.f32 0.0, %v583
          %585 = vdwg.mxu0
          %v586 = vadd.f32 %v565, %v584
          %v587 = vtanh.pop %v586
          %s588 = scalar_lea.vmem %s277, 40 [#allocation10]
          %589 = vst [vmem:[%s588] sm:$0xff] %v587
          %s590 = sadd.s32 48, %s429
          %s591 = scalar_lea.vmem [#allocation2], %s590
          %v592 = vld [vmem:[%s591] sm:$0xff]
          %593 = vmatpush.msra.mxu0 %v427
          %594 = vmatpush.msra.mxu0 %v426
          %595 = vmatpush.msra.mxu0 %v425
          %596 = vmatpush.msra.mxu0 %v424
          %597 = vmatpush.msra.mxu0 %v423
          %598 = vmatpush.msra.mxu0 %v422
          %599 = vmatpush.msra.mxu0 %v421
          %600 = vmatpush.msra.mxu0 %v420
          %601 = vmatpush.msra.mxu0 %v419
          %602 = vmatpush.msra.mxu0 %v418
          %603 = vmatpush.msra.mxu0 %v417
          %604 = vmatpush.msra.mxu0 %v416
          %605 = vmatpush.msra.mxu0 %v415
          %606 = vmatpush.msra.mxu0 %v414
          %607 = vmatpush.msra.mxu0 %v413
          %608 = vmatpush.msra.mxu0 %v412
          %609 = vmatmul.f32.gmra.mxu0 %v587
          %v610 = vpop.f32.mrf.mxu0
          %v611 = vadd.f32 0.0, %v610
          %612 = vdwg.mxu0
          %v613 = vadd.f32 %v592, %v611
          %v614 = vtanh.pop %v613
          %s615 = scalar_lea.vmem %s277, 48 [#allocation10]
          %616 = vst [vmem:[%s615] sm:$0xff] %v614
          %s617 = sadd.s32 56, %s429
          %s618 = scalar_lea.vmem [#allocation2], %s617
          %v619 = vld [vmem:[%s618] sm:$0xff]
          %620 = vmatpush.msra.mxu0 %v427
          %621 = vmatpush.msra.mxu0 %v426
          %622 = vmatpush.msra.mxu0 %v425
          %623 = vmatpush.msra.mxu0 %v424
          %624 = vmatpush.msra.mxu0 %v423
          %625 = vmatpush.msra.mxu0 %v422
          %626 = vmatpush.msra.mxu0 %v421
          %627 = vmatpush.msra.mxu0 %v420
          %628 = vmatpush.msra.mxu0 %v419
          %629 = vmatpush.msra.mxu0 %v418
          %630 = vmatpush.msra.mxu0 %v417
          %631 = vmatpush.msra.mxu0 %v416
          %632 = vmatpush.msra.mxu0 %v415
          %633 = vmatpush.msra.mxu0 %v414
          %634 = vmatpush.msra.mxu0 %v413
          %635 = vmatpush.msra.mxu0 %v412
          %636 = vmatmul.f32.gmra.mxu0 %v614
          %v637 = vpop.f32.mrf.mxu0
          %v638 = vadd.f32 0.0, %v637
          %639 = vdwg.mxu0
          %v640 = vadd.f32 %v619, %v638
          %v641 = vtanh.pop %v640
          %s642 = scalar_lea.vmem %s277, 56 [#allocation10]
          %643 = vst [vmem:[%s642] sm:$0xff] %v641
          %644 = vst [vmem:[#allocation3] sm:$0xff] %v641
        $region60: #{tpu_custom_call.1} parent=35 // pred_fallthru
          _
        %s645 = sand.u32 %s145, 1
        %s646 = scalar_lea.sflag [#allocation6], %s645
        %s647 = sand.u32 %s145, 1
        %s648 = smul.addr %s647, 64
        %s649 = scalar_lea.vmem [#allocation10], %s648
        // Predicated region
        $region61: #{tpu_custom_call.1} parent=35 // pred_check
          %p650 = pneg %p155
        $region62: #{tpu_custom_call.1} parent=35 // pred_check_branch
          %652 = sbr.rel (%p650) target = $region64
        $region63: #{tpu_custom_call.1} parent=35 // pred_region
          %s653 = ssub.s32 %s27, 1
          %p654 = scmp.gt.s32.totalorder %s653, 0
          %s655 = scalar_select %p654, %s653, 0
          %s656 = smul.u32 8, %s655
          %658 = vsyncadd %s646, 0
          %s659 = sadd.s32 %s26, %s656
          %s660 = smul.addr %s659, 8
          %s661 = scalar_lea.hbm %s4, %s660
          %s662 = sshll.u32 %s649, 4
          %s663 = int_to_ptr.vmem [resolvable:$true] %s662
          %s664 = sshll.u32 %s661, 4
          %s665 = int_to_ptr.hbm [resolvable:$true] %s664
          %670 = dma.vmem_to_hbm [thread:$0]  %s663, 1024, %s665, %s646, 128, 128, 8
        $region64: #{tpu_custom_call.1} parent=35 // pred_fallthru
          _
      $region36: #{tpu_custom_call.1} parent=5 // pred_fallthru
        _
      %p671 = scmp.le.s32.totalorder 2, %s17
      // Predicated region
      $region65: #{tpu_custom_call.1} parent=5 // pred_check
        %p672 = pneg %p671
      $region66: #{tpu_custom_call.1} parent=5 // pred_check_branch
        %674 = sbr.rel (%p672) target = $region68
      $region67: #{tpu_custom_call.1} parent=5 // pred_region
        %s675 = ssub.s32 %s17, 2
        // Predicated region
        $region69: #{tpu_custom_call.1} parent=67 // pred_check
          %p676 = pneg %p161
        $region70: #{tpu_custom_call.1} parent=67 // pred_check_branch
          %678 = sbr.rel (%p676) target = $region72
        $region71: #{tpu_custom_call.1} parent=67 // pred_region
          %s679 = sand.u32 %s146, 1
          %s680 = scalar_lea.sflag [#allocation6], %s679
          %s681 = sand.u32 %s146, 1
          %s682 = smul.addr %s681, 64
          %s683 = scalar_lea.vmem [#allocation10], %s682
          %685 = dma.done %s680, 1024
        $region72: #{tpu_custom_call.1} parent=67 // pred_fallthru
          _
      $region68: #{tpu_custom_call.1} parent=5 // pred_fallthru
        _
    $region6: #{tpu_custom_call.1} parent=1 // loop_footer
      %s21 = sadd.s32 1, %s17
    $region7: #{tpu_custom_call.1} parent=1 // loop_footer_branch
      %16 = sbr.rel target = $region3
    $region8: #{tpu_custom_call.1} parent=1 // loop_exit
      _
    %686 = vsyncpa [#allocation5], 1
    %s687 = scalar_lea.sflag [#allocation5], 1
    %688 = vsyncpa %s687, 1
    %689 = vsyncpa [#allocation8], 1
    %690 = vsyncpa [#allocation6], 1
    %s691 = scalar_lea.sflag [#allocation6], 1
    %692 = vsyncpa %s691, 1

</llo_original>
